<compile_context>
chip_gen: v5e
topology: v5e:2x2
jax: 0.10.0
libtpu: 0.0.40
codegen_flags: <defaults>
</compile_context>

<pallas_src>
import jax
import jax.numpy as jnp
from jax.experimental import pallas as pl
from jax.experimental.pallas import tpu as pltpu


# --------------------------------------------------------------------------- #
# Kernel
# --------------------------------------------------------------------------- #
def _grid_layer_kernel(x_ref, wb_ref, o_ref):
    """x_ref: (TB, Hp); wb_ref: (4, Hp) rows = [w0, w1, w2, bias]; o_ref: (TB, Hp)."""
    x = x_ref[...].astype(jnp.float32)                     # (TB, Hp)
    wb = wb_ref[...].astype(jnp.float32)                   # (4, Hp)
    Hp = x.shape[-1]
    # Neighbours via XLU rotations; wrapped-around values hit zero weight taps.
    x_left = pltpu.roll(x, shift=1, axis=1)                # x[b, i-1]
    x_right = pltpu.roll(x, shift=Hp - 1, axis=1)          # x[b, i+1]
    acc = (x_left * wb[0:1, :]
           + x * wb[1:2, :]
           + x_right * wb[2:3, :]
           + wb[3:4, :])
    o_ref[...] = jnp.sin(acc).astype(o_ref.dtype)


# --------------------------------------------------------------------------- #
# Wrapper helpers
# --------------------------------------------------------------------------- #
def _vmem_budget():
    """Generation-aware (target_block_bytes, vmem_limit_bytes)."""
    vmem = None
    try:
        info = pltpu.get_tpu_info()
        vmem = getattr(info, "vmem_capacity_bytes", None)
    except Exception:
        vmem = None
    if vmem is None:
        vmem = 64 * 1024 * 1024                      # conservative (v7x per-TC)
    if vmem >= 100 * 1024 * 1024:                    # v5e / v6e: 128 MiB physical
        return 4 * 1024 * 1024, 64 * 1024 * 1024
    return 2 * 1024 * 1024, 32 * 1024 * 1024         # v7x: 64 MiB per TensorCore


def _choose_batch_tile(B, Hp, itemsize, target_block_bytes, min_steps=8):
    """Pick a sublane-aligned batch tile that (a) fits the per-block VMEM budget
    (2x in + 2x out double buffers + a few f32 temporaries) and (b) leaves the
    grid with >= min_steps iterations so DMA/compute overlap and v7x's second
    TensorCore are actually used."""
    mult = 8 * max(1, 4 // itemsize)                 # 8 f32 / 16 bf16 / 32 int8
    tb = target_block_bytes // max(Hp * itemsize, 1)
    tb = max(mult, (tb // mult) * mult)
    # Cap so the grid keeps at least ~min_steps iterations.
    cap = pl.cdiv(B, min_steps)
    cap = max(mult, ((cap + mult - 1) // mult) * mult)
    tb = min(tb, cap, max(B, 1))
    if tb < B:
        tb = max(mult, (tb // mult) * mult)
    return tb


# --------------------------------------------------------------------------- #
# Wrapper
# --------------------------------------------------------------------------- #
def grid_layer(x, weight, bias, *, block_batch=None):
    """x: (B, H); weight: (H,) unpadded parameter; bias: (H,). Returns (B, H)."""
    B, H = x.shape
    dtype = x.dtype
    itemsize = jnp.dtype(dtype).itemsize
    pad = 1  # int(0.5 * (kernel_size - 1)) with kernel_size = 3

    # Lane-aligned width (multiple of 128). Padded taps/bias are zero -> exact.
    Hp = max(128, ((H + 127) // 128) * 128)

    # Unfold the zero-padded weight into three lane-dense tap rows and pack
    # them together with the bias into a single resident (4, Hp) block:
    #   w0[i]=wpad[i] (0 at i=0), w1[i]=weight[i], w2[i]=wpad[i+2] (0 at i=H-1).
    wpad = jnp.pad(weight.astype(dtype), (pad, pad))        # (H+2,)
    wb = jnp.stack([wpad[0:H], wpad[1:H + 1], wpad[2:H + 2],
                    bias.astype(dtype)], axis=0)            # (4, H)
    if Hp != H:
        wb = jnp.pad(wb, ((0, 0), (0, Hp - H)))
        xk = jnp.pad(x, ((0, 0), (0, Hp - H)))
    else:
        xk = x

    target_block_bytes, vmem_limit = _vmem_budget()
    if block_batch is not None:
        tb = min(block_batch, B)
    else:
        tb = _choose_batch_tile(B, Hp, itemsize, target_block_bytes)
    grid = (pl.cdiv(B, tb),)

    batched = lambda i: (i, 0)
    resident = lambda i: (0, 0)          # weights/bias fetched once, stay resident

    out = pl.pallas_call(
        _grid_layer_kernel,
        grid=grid,
        in_specs=[pl.BlockSpec((tb, Hp), batched),
                  pl.BlockSpec((4, Hp), resident)],
        out_specs=pl.BlockSpec((tb, Hp), batched),
        out_shape=jax.ShapeDtypeStruct((B, Hp), dtype),
        compiler_params=pltpu.CompilerParams(
            dimension_semantics=("parallel",),
            vmem_limit_bytes=vmem_limit,
        ),
        cost_estimate=pl.CostEstimate(
            flops=6 * B * Hp,
            transcendentals=B * Hp,
            bytes_accessed=itemsize * (2 * B * Hp + 4 * Hp),
        ),
    )(xk, wb)

    return out[:, :H] if Hp != H else out


# --------------------------------------------------------------------------- #
# Pure-JAX reference (mirrors the PyTorch forward)
# --------------------------------------------------------------------------- #
def grid_layer_ref(x, weight, bias):
    pad = 1
    xp = jnp.pad(x, ((0, 0), (pad, pad)))
    wp = jnp.pad(weight, (pad, pad))
    B, H = x.shape
    x_unf = jnp.stack([xp[:, k:k + H] for k in range(3)], axis=-1)   # (B, H, 3)
    w_unf = jnp.stack([wp[k:k + H] for k in range(3)], axis=-1)      # (H, 3)
    out = (w_unf[None] * x_unf).sum(-1) + bias[None]
    return jnp.sin(out)


# --------------------------------------------------------------------------- #
# Demo / self-check
# --------------------------------------------------------------------------- #
if __name__ == "__main__":
    # Small, lane-aligned shapes: batch=256 rows, grid_height=128.
    B, H = 256, 128
    kernel_size = 3

    key = jax.random.PRNGKey(0)
    kx, kw = jax.random.split(key)

    x = jax.random.normal(kx, (B, H), dtype=jnp.float32)

    # Deterministic xavier-uniform init: bound = sqrt(6 / (fan_in + fan_out)) = 1.0
    bound = float(jnp.sqrt(6.0 / (kernel_size + kernel_size)))
    weight = jax.random.uniform(kw, (H,), dtype=jnp.float32,
                                minval=-bound, maxval=bound)
    bias = jnp.zeros((H,), dtype=jnp.float32)

    # Default tile selection -> multi-step "parallel" grid (double buffering,
    # v7x dual-core sharding).
    out = grid_layer(x, weight, bias)
    out = jax.block_until_ready(out)

    ref = grid_layer_ref(x, weight, bias)
    assert out.shape == (B, H)
    assert jnp.allclose(out, ref, atol=1e-5, rtol=1e-5), "mismatch vs reference"

    # Explicit batch tile still works.
    out2 = jax.block_until_ready(grid_layer(x, weight, bias, block_batch=64))
    assert jnp.allclose(out2, ref, atol=1e-5, rtol=1e-5), "mismatch (block_batch=64)"

    # Non-128-multiple grid height (padded-to-128 path), tiny shapes.
    Hs, Bs = 16, 8
    xs = jax.random.normal(kx, (Bs, Hs), dtype=jnp.float32)
    ws = jax.random.uniform(kw, (Hs,), dtype=jnp.float32, minval=-1.0, maxval=1.0)
    bs = jnp.zeros((Hs,), dtype=jnp.float32)
    out_s = jax.block_until_ready(grid_layer(xs, ws, bs))
    assert out_s.shape == (Bs, Hs)
    assert jnp.allclose(out_s, grid_layer_ref(xs, ws, bs), atol=1e-5, rtol=1e-5)

    print("KERNEL_OK")
</pallas_src>

<mosaic_0001>
module attributes {stable_mosaic.version = 11 : i64} {
  func.func @_grid_layer_kernel(%arg0: i32, %arg1: memref<32x128xf32, #tpu.memory_space<vmem>>, %arg2: memref<4x128xf32, #tpu.memory_space<vmem>>, %arg3: memref<32x128xf32, #tpu.memory_space<vmem>>) attributes {dimension_semantics = [#tpu.dimension_semantics<parallel>], iteration_bounds = array<i64: 8>, scalar_prefetch = 0 : i64, scratch_operands = 0 : i64, tpu.core_type = #tpu.core_type<tc>, window_params = [{transform_indices = @transform_0, window_bounds = array<i64: 32, 128>}, {pipeline_mode = #tpu.pipeline_mode<synchronous>, transform_indices = @transform_1, window_bounds = array<i64: 4, 128>}, {transform_indices = @transform_2, window_bounds = array<i64: 32, 128>}]} {
    %c0 = arith.constant 0 : index
    %c0_0 = arith.constant 0 : index
    %0 = vector.load %arg1[%c0, %c0_0] : memref<32x128xf32, #tpu.memory_space<vmem>>, vector<32x128xf32>
    %c0_1 = arith.constant 0 : index
    %c0_2 = arith.constant 0 : index
    %1 = vector.load %arg2[%c0_1, %c0_2] : memref<4x128xf32, #tpu.memory_space<vmem>>, vector<4x128xf32>
    %c1_i32 = arith.constant 1 : i32
    %2 = tpu.dynamic_rotate %0 by %c1_i32 dim 1 : vector<32x128xf32>, i32 -> vector<32x128xf32>
    %c127_i32 = arith.constant 127 : i32
    %3 = tpu.dynamic_rotate %0 by %c127_i32 dim 1 : vector<32x128xf32>, i32 -> vector<32x128xf32>
    %4 = vector.extract_strided_slice %1 {offsets = [0, 0], sizes = [1, 128], strides = [1, 1]} : vector<4x128xf32> to vector<1x128xf32>
    %5 = vector.broadcast %4 : vector<1x128xf32> to vector<32x128xf32>
    %6 = arith.mulf %2, %5 : vector<32x128xf32>
    %7 = vector.extract_strided_slice %1 {offsets = [1, 0], sizes = [1, 128], strides = [1, 1]} : vector<4x128xf32> to vector<1x128xf32>
    %8 = vector.broadcast %7 : vector<1x128xf32> to vector<32x128xf32>
    %9 = arith.mulf %0, %8 : vector<32x128xf32>
    %10 = arith.addf %6, %9 : vector<32x128xf32>
    %11 = vector.extract_strided_slice %1 {offsets = [2, 0], sizes = [1, 128], strides = [1, 1]} : vector<4x128xf32> to vector<1x128xf32>
    %12 = vector.broadcast %11 : vector<1x128xf32> to vector<32x128xf32>
    %13 = arith.mulf %3, %12 : vector<32x128xf32>
    %14 = arith.addf %10, %13 : vector<32x128xf32>
    %15 = vector.extract_strided_slice %1 {offsets = [3, 0], sizes = [1, 128], strides = [1, 1]} : vector<4x128xf32> to vector<1x128xf32>
    %16 = vector.broadcast %15 : vector<1x128xf32> to vector<32x128xf32>
    %17 = arith.addf %14, %16 : vector<32x128xf32>
    %18 = math.sin %17 : vector<32x128xf32>
    %c0_3 = arith.constant 0 : index
    %c0_4 = arith.constant 0 : index
    %19 = vector.load %arg3[%c0_3, %c0_4] : memref<32x128xf32, #tpu.memory_space<vmem>>, vector<32x128xf32>
    tpu.vector_store %arg3[%c0_3, %c0_4], %18 {strides = array<i32>} : memref<32x128xf32, #tpu.memory_space<vmem>>, vector<32x128xf32>,
    return
  }
  func.func @transform_0(%arg0: i32) -> (i32, i32) {
    %c0_i32 = arith.constant 0 : i32
    %c0_i32_0 = arith.constant 0 : i32
    return %arg0, %c0_i32 : i32, i32
  }
  func.func @transform_1(%arg0: i32) -> (i32, i32) {
    %c0_i32 = arith.constant 0 : i32
    %c0_i32_0 = arith.constant 0 : i32
    %c0_i32_1 = arith.constant 0 : i32
    return %c0_i32, %c0_i32_0 : i32, i32
  }
  func.func @transform_2(%arg0: i32) -> (i32, i32) {
    %c0_i32 = arith.constant 0 : i32
    %c0_i32_0 = arith.constant 0 : i32
    return %arg0, %c0_i32 : i32, i32
  }
}

</mosaic_0001>

<llo_original>
// kernel: tpu_custom_call.1
$region0: #{tpu_custom_call.1}
  #allocation0 [shape = 'u32[]', space=smem, size = 0x4, offset = 0x4, fixed_abs, tag = 'smem constant byte address 0x4 - core index']
  #allocation1 [shape = 'u32[72,128]{1,0:T(1,128)}', space=vmem, size = 0x9000, scoped, tag = 'internal scratch']
  %s0 = inlined_call_operand.hbm [shape: f32[256,128], index: 0, kind: input, shape index: {}]
  %s1 = inlined_call_operand.hbm [shape: f32[4,128], index: 1, kind: input, shape index: {}]
  %s2 = inlined_call_operand.hbm [shape: f32[256,128], index: 2, kind: output, shape index: {}]
  %s3 = sld [smem:[#allocation0]]
  $region49: #{tpu_custom_call.1} parent=0
    _
  %s5 = ssub.s32 1, %s3
  %s6 = scalar_select 0, %s5, %s3
  $region1: #{tpu_custom_call.1} parent=0
    #allocation2 [shape = 'u8[32768]{0}', space=vmem, size = 0x8000, scoped, tag = 'input window, operand 0']
    #allocation3 [shape = 's32[2]{0}', space=sflag, size = 0x8, scoped, tag = 'scoped memory for tpu_custom_call.1']
    #allocation4 [shape = 's32[2]{0}', space=sflag, size = 0x8, scoped, tag = 'scoped memory for tpu_custom_call.1']
    #allocation5 [shape = 'u8[2048]{0}', space=vmem, size = 0x800, scoped, tag = 'input window, operand 1, single buffered']
    #allocation6 [shape = 's32[1]{0}', space=sflag, size = 0x4, scoped, tag = 'scoped memory for tpu_custom_call.1']
    #allocation7 [shape = 'u8[32768]{0}', space=vmem, size = 0x8000, scoped, tag = 'output window, operand 0']
    %7 = vsyncpa [#allocation3], 0
    %s8 = scalar_lea.sflag [#allocation3], 1
    %9 = vsyncpa %s8, 0
    %10 = vsyncpa [#allocation6], 0
    %11 = vsyncpa [#allocation4], 0
    %s12 = scalar_lea.sflag [#allocation4], 1
    %13 = vsyncpa %s12, 0
    loop: start=0, step=1, limit=10
    $region2: #{tpu_custom_call.1} parent=1 // loop_pre_header
      _
    $region3: #{tpu_custom_call.1} parent=1 // loop_header
      %s15 = sphi 0, %s19
      %p16 = scmp.ge.s32.totalorder %s15, 10
      %s25 = sphi 0, %s27
      %s28 = sphi 0, %s25
      %s29 = sphi 0, %s28
      %s45 = sphi 0, %s29
      %s49 = sphi 0, %s49
      %s51 = sphi 0, %s49
      %s52 = sphi 0, %s51
      %s66 = sphi 0, %s52
      %s72 = sphi 0, %s74
      %s75 = sphi 0, %s72
      %s76 = sphi 0, %s75
      %s92 = sphi 0, %s76
    $region4: #{tpu_custom_call.1} parent=1 // loop_header_branch
      %18 = sbr.rel (%p16) target = $region8
    $region5: #{tpu_custom_call.1} parent=1 // loop_body
      %s20 = ssub.s32 %s15, 1
      %s21 = ssub.s32 %s15, 2
      %s22 = sadd.s32 %s15, 1
      %s23 = ssub.s32 %s15, %s22
      %p24 = scmp.eq.s32.totalorder %s23, 0
      %s26 = sadd.s32 %s25, 1
      %s27 = scalar_select %p24, %s25, %s26
      %p30 = pneg %p24
      %p31 = scmp.eq.s32.totalorder %s15, 7
      %p32 = por %p30, %p31
      %p33 = scmp.ne.s32.totalorder %s25, %s28
      %p34 = scmp.eq.s32.totalorder %s15, 0
      %p35 = por %p33, %p34
      %p36 = scmp.ne.s32.totalorder %s25, %s28
      %p37 = scmp.eq.s32.totalorder %s20, 7
      %p38 = por %p36, %p37
      %p39 = scmp.ne.s32.totalorder %s28, %s29
      %p40 = scmp.eq.s32.totalorder %s20, 0
      %p41 = por %p39, %p40
      %p42 = scmp.ne.s32.totalorder %s28, %s29
      %p43 = scmp.eq.s32.totalorder %s21, 7
      %p44 = por %p42, %p43
      %p46 = scmp.ne.s32.totalorder %s29, %s45
      %p47 = scmp.eq.s32.totalorder %s21, 0
      %p48 = por %p46, %p47
      %s50 = sadd.s32 %s49, 1
      %p53 = scmp.eq.s32.totalorder %s15, 7
      %p54 = scmp.ne.s32.totalorder %s49, %s51
      %p55 = scmp.eq.s32.totalorder %s15, 0
      %p56 = por %p54, %p55
      %p57 = scmp.ne.s32.totalorder %s49, %s51
      %p58 = scmp.eq.s32.totalorder %s20, 7
      %p59 = por %p57, %p58
      %p60 = scmp.ne.s32.totalorder %s51, %s52
      %p61 = scmp.eq.s32.totalorder %s20, 0
      %p62 = por %p60, %p61
      %p63 = scmp.ne.s32.totalorder %s51, %s52
      %p64 = scmp.eq.s32.totalorder %s21, 7
      %p65 = por %p63, %p64
      %p67 = scmp.ne.s32.totalorder %s52, %s66
      %p68 = scmp.eq.s32.totalorder %s21, 0
      %p69 = por %p67, %p68
      %s70 = ssub.s32 %s15, %s22
      %p71 = scmp.eq.s32.totalorder %s70, 0
      %s73 = sadd.s32 %s72, 1
      %s74 = scalar_select %p71, %s72, %s73
      %p77 = pneg %p71
      %p78 = scmp.eq.s32.totalorder %s15, 7
      %p79 = por %p77, %p78
      %p80 = scmp.ne.s32.totalorder %s72, %s75
      %p81 = scmp.eq.s32.totalorder %s15, 0
      %p82 = por %p80, %p81
      %p83 = scmp.ne.s32.totalorder %s72, %s75
      %p84 = scmp.eq.s32.totalorder %s20, 7
      %p85 = por %p83, %p84
      %p86 = scmp.ne.s32.totalorder %s75, %s76
      %p87 = scmp.eq.s32.totalorder %s20, 0
      %p88 = por %p86, %p87
      %p89 = scmp.ne.s32.totalorder %s75, %s76
      %p90 = scmp.eq.s32.totalorder %s21, 7
      %p91 = por %p89, %p90
      %p93 = scmp.ne.s32.totalorder %s76, %s92
      %p94 = scmp.eq.s32.totalorder %s21, 0
      %p95 = por %p93, %p94
      %p96 = scmp.le.s32.totalorder 1, %s15
      %p97 = scmp.lt.s32.totalorder %s15, 9
      %p98 = pnand %p96, %p97
      %p99 = pneg %p98
      // Predicated region
      $region9: #{tpu_custom_call.1} parent=5 // pred_check
        _
      $region10: #{tpu_custom_call.1} parent=5 // pred_check_branch
        %101 = sbr.rel (%p98) target = $region12
      $region11: #{tpu_custom_call.1} parent=5 // pred_region
        %s102 = ssub.s32 %s15, 1
        // Predicated region
        $region13: #{tpu_custom_call.1} parent=11 // pred_check
          %p103 = pneg %p62
        $region14: #{tpu_custom_call.1} parent=11 // pred_check_branch
          %105 = sbr.rel (%p103) target = $region16
        $region15: #{tpu_custom_call.1} parent=11 // pred_region
          %107 = vsyncadd [#allocation6], 0
          %s109 = sshll.u32 %s1, 4
          %s110 = int_to_ptr.hbm [resolvable:$true] %s109
          %s111 = sshll.u32 [#allocation5], 4
          %s112 = int_to_ptr.vmem [resolvable:$true] %s111
          %114 = dma.hbm_to_vmem [thread:$0]  %s110, 64, %s112, [#allocation6]
        $region16: #{tpu_custom_call.1} parent=11 // pred_fallthru
          _
      $region12: #{tpu_custom_call.1} parent=5 // pred_fallthru
        _
      %p115 = scmp.lt.s32.totalorder %s15, 8
      // Predicated region
      $region17: #{tpu_custom_call.1} parent=5 // pred_check
        %p116 = pneg %p115
      $region18: #{tpu_custom_call.1} parent=5 // pred_check_branch
        %118 = sbr.rel (%p116) target = $region20
      $region19: #{tpu_custom_call.1} parent=5 // pred_region
        // Predicated region
        $region21: #{tpu_custom_call.1} parent=19 // pred_check
          %p119 = pneg %p35
        $region22: #{tpu_custom_call.1} parent=19 // pred_check_branch
          %121 = sbr.rel (%p119) target = $region24
        $region23: #{tpu_custom_call.1} parent=19 // pred_region
          %s122 = sand.u32 %s25, 1
          %s123 = scalar_lea.sflag [#allocation3], %s122
          %s124 = sand.u32 %s25, 1
          %s125 = smul.addr %s124, 32
          %s126 = scalar_lea.vmem [#allocation2], %s125
          %s127 = smul.u32 4, %s15
          %129 = vsyncadd %s123, 0
          %s130 = smul.addr %s127, 8
          %s131 = scalar_lea.hbm %s0, %s130
          %s132 = sshll.u32 %s131, 4
          %s133 = int_to_ptr.hbm [resolvable:$true] %s132
          %s134 = sshll.u32 %s126, 4
          %s135 = int_to_ptr.vmem [resolvable:$true] %s134
          %140 = dma.hbm_to_vmem [thread:$0]  %s133, 512, %s135, %s123, 128, 128, 8
        $region24: #{tpu_custom_call.1} parent=19 // pred_fallthru
          _
      $region20: #{tpu_custom_call.1} parent=5 // pred_fallthru
        _
      %p141 = scmp.le.s32.totalorder 1, %s15
      %p142 = scmp.lt.s32.totalorder %s15, 9
      %p143 = pnand %p141, %p142
      %p144 = pneg %p143
      // Predicated region
      $region25: #{tpu_custom_call.1} parent=5 // pred_check
        _
      $region26: #{tpu_custom_call.1} parent=5 // pred_check_branch
        %146 = sbr.rel (%p143) target = $region28
      $region27: #{tpu_custom_call.1} parent=5 // pred_region
        %s147 = ssub.s32 %s15, 1
        %s148 = sand.u32 %s28, 1
        %s149 = scalar_lea.sflag [#allocation3], %s148
        %s150 = sand.u32 %s28, 1
        %s151 = smul.addr %s150, 32
        %s152 = scalar_lea.vmem [#allocation2], %s151
        // Predicated region
        $region29: #{tpu_custom_call.1} parent=27 // pred_check
          %p153 = pneg %p41
        $region30: #{tpu_custom_call.1} parent=27 // pred_check_branch
          %155 = sbr.rel (%p153) target = $region32
        $region31: #{tpu_custom_call.1} parent=27 // pred_region
          %157 = dma.done %s149, 512
        $region32: #{tpu_custom_call.1} parent=27 // pred_fallthru
          _
        // Predicated region
        $region33: #{tpu_custom_call.1} parent=27 // pred_check
          %p158 = pneg %p62
        $region34: #{tpu_custom_call.1} parent=27 // pred_check_branch
          %160 = sbr.rel (%p158) target = $region36
        $region35: #{tpu_custom_call.1} parent=27 // pred_region
          %162 = dma.done [#allocation6], 64
        $region36: #{tpu_custom_call.1} parent=27 // pred_fallthru
          _
        %s163 = sand.u32 %s28, 1
        %s164 = scalar_lea.sflag [#allocation3], %s163
        %s165 = sand.u32 %s28, 1
        %s166 = smul.addr %s165, 32
        %s167 = scalar_lea.vmem [#allocation2], %s166
        %p168 = pneg %p41
        %p169 = pneg %p38
        %p170 = pneg %p62
        %p171 = pneg %p59
        %p172 = pneg %p88
        %p173 = pneg %p85
        %s174 = sand.u32 %s75, 1
        %s175 = scalar_lea.sflag [#allocation4], %s174
        %s176 = sand.u32 %s75, 1
        %s177 = smul.addr %s176, 32
        %s178 = scalar_lea.vmem [#allocation7], %s177
        %s179 = smul.u32 4, %s20
        %s180 = smul.u32 4, %s20
        %v181 = vld [vmem:[%s152] sm:$0xff]
        %v182 = vld [vmem:[%s152 + $0x8] sm:$0xff]
        %v183 = vld [vmem:[%s152 + $0x10] sm:$0xff]
        %v184 = vld [vmem:[%s152 + $0x18] sm:$0xff]
        %v185 = vld [vmem:[#allocation5] sm:$0xf]
        %186 = vrot.lane.b32.xlu0 %v181, 1
        %v187 = vpop.permute.xlu0 %186
        %188 = vrot.lane.b32.xlu0 %v182, 1
        %v189 = vpop.permute.xlu0 %188
        %190 = vrot.lane.b32.xlu0 %v183, 1
        %v191 = vpop.permute.xlu0 %190
        %192 = vrot.lane.b32.xlu0 %v184, 1
        %v193 = vpop.permute.xlu0 %192
        %194 = vrot.lane.b32.xlu0 %v181, 127
        %v195 = vpop.permute.xlu0 %194
        %196 = vrot.lane.b32.xlu0 %v182, 127
        %v197 = vpop.permute.xlu0 %196
        %198 = vrot.lane.b32.xlu0 %v183, 127
        %v199 = vpop.permute.xlu0 %198
        %200 = vrot.lane.b32.xlu0 %v184, 127
        %v201 = vpop.permute.xlu0 %200
        %v202 = vperm.slane %v185, 0
        %v203 = vmul.f32 %v187, %v202
        %v204 = vmul.f32 %v189, %v202
        %v205 = vmul.f32 %v191, %v202
        %v206 = vmul.f32 %v193, %v202
        %v207 = vperm.slane %v185, 1
        %v208 = vmul.f32 %v181, %v207
        %v209 = vmul.f32 %v182, %v207
        %v210 = vmul.f32 %v183, %v207
        %v211 = vmul.f32 %v184, %v207
        %v212 = vadd.f32 %v203, %v208
        %v213 = vadd.f32 %v204, %v209
        %v214 = vadd.f32 %v205, %v210
        %v215 = vadd.f32 %v206, %v211
        %v216 = vperm.slane %v185, 2
        %v217 = vmul.f32 %v195, %v216
        %v218 = vmul.f32 %v197, %v216
        %v219 = vmul.f32 %v199, %v216
        %v220 = vmul.f32 %v201, %v216
        %v221 = vadd.f32 %v212, %v217
        %v222 = vadd.f32 %v213, %v218
        %v223 = vadd.f32 %v214, %v219
        %v224 = vadd.f32 %v215, %v220
        %v225 = vperm.slane %v185, 3
        %v226 = vadd.f32 %v221, %v225
        %v227 = vadd.f32 %v222, %v225
        %v228 = vadd.f32 %v223, %v225
        %v229 = vadd.f32 %v224, %v225
        %v230 = vand.u32 2147483647, %v226
        %vm231 = vcmp.le.f32.partialorder %v230, 0.7853982
        %vm232 = vcmp.lt.s32.totalorder %v226, 0
        %v233 = vand.u32 %v226, 2139095040
        %v234 = vshrl.u32 %v233, 23
        %v235 = vsub.s32 %v234, 127
        %v236 = vand.u32 2147483647, %v226
        %v237 = vand.u32 %v236, 8388607
        %v238 = vor.u32 %v237, 8388608
        %v239 = vsub.s32 0, %v238
        %v240 = vadd.s32 %v235, 1
        %vm241 = vcmp.gt.s32.totalorder %v240, 0
        %v242 = vsel %vm241, %v240, 0
        %v243 = vshrl.u32 %v242, 5
        %v244 = vand.u32 %v242, 31
        %v245 = vsub.s32 32, %v244
        %v246 = vshrl.u32 683565275, %v245
        %v247 = vshll.u32 683565275, %v244
        %v248 = vshrl.u32 2475754826, %v245
        %v249 = vor.u32 %v247, %v248
        %v250 = vshll.u32 2475754826, %v244
        %v251 = vshrl.u32 2131351028, %v245
        %v252 = vor.u32 %v250, %v251
        %v253 = vshll.u32 2131351028, %v244
        %v254 = vshrl.u32 2102212464, %v245
        %v255 = vor.u32 %v253, %v254
        %v256 = vshll.u32 2102212464, %v244
        %v257 = vshrl.u32 920167782, %v245
        %v258 = vor.u32 %v256, %v257
        %v259 = vshll.u32 920167782, %v244
        %v260 = vshrl.u32 1326507024, %v245
        %v261 = vor.u32 %v259, %v260
        %vm262 = vcmp.lt.s32.totalorder %v243, 1
        %vm263 = vcmp.lt.s32.totalorder %v243, 2
        %vm264 = vcmp.lt.s32.totalorder %v243, 3
        %vm265 = vcmp.lt.s32.totalorder %v243, 4
        %v266 = vsel %vm262, %v246, %v249
        %v267 = vsel %vm265, %v255, 2102212464
        %v268 = vsel %vm264, %v252, %v267
        %v269 = vsel %vm263, %v266, %v268
        %v270 = vsel %vm262, %v249, %v252
        %v271 = vsel %vm265, %v258, 920167782
        %v272 = vsel %vm264, %v255, %v271
        %v273 = vsel %vm263, %v270, %v272
        %v274 = vsel %vm262, %v252, %v255
        %v275 = vsel %vm265, %v261, 1326507024
        %v276 = vsel %vm264, %v258, %v275
        %v277 = vsel %vm263, %v274, %v276
        %v278 = vshll.u32 %v238, 8
        %v279 = vand.u32 %v278, 65535
        %v280 = vshrl.u32 %v278, 16
        %v281 = vand.u32 %v277, 65535
        %v282 = vshrl.u32 %v277, 16
        %v283 = vmul.u32 %v279, %v281
        %v284 = vmul.u32 %v279, %v282
        %v285 = vmul.u32 %v280, %v281
        %v286 = vmul.u32 %v280, %v282
        %v287 = vshll.u32 %v284, 16
        %v288 = vshrl.u32 %v284, 16
        %v289 = vshll.u32 %v285, 16
        %v290 = vshrl.u32 %v285, 16
        %vm291 = vc.u32 %v283, %v287
        %v292 = vsel %vm291, 1, 0
        %v293 = vadd.s32 %v283, %v287
        %v294 = vadd.s32 %v286, %v292
        %vm295 = vc.u32 %v293, %v289
        %v296 = vsel %vm295, 1, 0
        %v297 = vadd.s32 %v293, %v289
        %v298 = vadd.s32 %v294, %v296
        %v299 = vadd.s32 %v298, %v288
        %v300 = vadd.s32 %v299, %v290
        %v301 = vand.u32 %v278, 65535
        %v302 = vshrl.u32 %v278, 16
        %v303 = vand.u32 %v273, 65535
        %v304 = vshrl.u32 %v273, 16
        %v305 = vmul.u32 %v301, %v303
        %v306 = vmul.u32 %v301, %v304
        %v307 = vmul.u32 %v302, %v303
        %v308 = vmul.u32 %v302, %v304
        %v309 = vshll.u32 %v306, 16
        %v310 = vshrl.u32 %v306, 16
        %v311 = vshll.u32 %v307, 16
        %v312 = vshrl.u32 %v307, 16
        %vm313 = vc.u32 %v305, %v309
        %v314 = vsel %vm313, 1, 0
        %v315 = vadd.s32 %v305, %v309
        %v316 = vadd.s32 %v308, %v314
        %vm317 = vc.u32 %v315, %v311
        %v318 = vsel %vm317, 1, 0
        %v319 = vadd.s32 %v315, %v311
        %v320 = vadd.s32 %v316, %v318
        %v321 = vadd.s32 %v320, %v310
        %v322 = vadd.s32 %v321, %v312
        %v323 = vmul.u32 %v278, %v269
        %v324 = vadd.s32 %v300, %v319
        %vm325 = vc.u32 %v300, %v319
        %v326 = vadd.s32 %v322, 1
        %v327 = vsel %vm325, %v326, %v322
        %v328 = vadd.s32 %v323, %v327
        %v329 = vadd.s32 %v328, 536870912
        %v330 = vshrl.u32 %v329, 30
        %v331 = vshll.u32 %v330, 30
        %v332 = vsub.s32 %v328, %v331
        %vm333 = vcmp.lt.s32.totalorder %v332, 0
        %v334 = vsub.s32 0, %v332
        %v335 = vsel %vm333, %v334, %v332
        %v336 = vclz %v335
        %v337 = vsub.s32 %v336, 2
        %vm338 = vcmp.gt.s32.totalorder 0, %v337
        %v339 = vsel %vm338, 0, %v337
        %v340 = vsub.s32 32, %v339
        %v341 = vshll.u32 %v332, %v339
        %v342 = vshrl.u32 %v324, %v340
        %v343 = vor.u32 %v341, %v342
        %v344 = vsub.s32 4294967266, %v339
        %v345 = vadd.s32 %v344, 127
        %v346 = vshll.u32 %v345, 23
        %v347 = vor.u32 4788187, %v346
        %v348 = vand.u32 2147483647, %v347
        %v350 = vcvt.s32.f32 %v343
        %v351 = vmul.f32 %v350, %v348
        %v352 = vxor.u32 %v351, 2147483648
        %v353 = vsel %vm232, %v352, %v351
        %v354 = vsub.s32 4, %v330
        %v355 = vsel %vm232, %v354, %v330
        %v356 = vsel %vm231, %v226, %v353
        %v357 = vsel %vm231, 0, %v355
        %v358 = vmul.f32 %v356, %v356
        %v359 = vmul.f32 %v358, -0.001358992
        %v360 = vadd.f32 %v359, 0.041655596
        %v361 = vmul.f32 %v358, %v360
        %v362 = vadd.f32 %v361, -0.4999988
        %v363 = vmul.f32 %v358, %v362
        %v364 = vadd.f32 1.0, %v363
        %v365 = vmul.f32 %v356, %v356
        %v366 = vmul.f32 %v365, -0.00019511016
        %v367 = vadd.f32 %v366, 0.008332121
        %v368 = vmul.f32 %v365, %v367
        %v369 = vadd.f32 %v368, -0.16666654
        %v370 = vmul.f32 %v365, %v369
        %v371 = vadd.f32 %v370, 1.0
        %v372 = vmul.f32 %v371, %v356
        %vm373 = vweird.f32 %v226
        %v374 = vadd.s32 %v357, 3
        %v375 = vand.u32 %v374, 3
        %vm376 = vcmp.lt.s32.totalorder %v375, 2
        %vm377 = vcmp.eq.s32.totalorder %v375, 0
        %v378 = vxor.u32 %v372, 2147483648
        %v379 = vsel %vm377, %v364, %v378
        %vm380 = vcmp.eq.s32.totalorder %v375, 2
        %v381 = vxor.u32 %v364, 2147483648
        %v382 = vsel %vm380, %v381, %v372
        %v383 = vsel %vm376, %v379, %v382
        %v384 = vsel %vm373, nan, %v383
        %v385 = vand.u32 2147483647, %v227
        %vm386 = vcmp.le.f32.partialorder %v385, 0.7853982
        %vm387 = vcmp.lt.s32.totalorder %v227, 0
        %v388 = vand.u32 %v227, 2139095040
        %v389 = vshrl.u32 %v388, 23
        %v390 = vsub.s32 %v389, 127
        %v391 = vand.u32 2147483647, %v227
        %v392 = vand.u32 %v391, 8388607
        %v393 = vor.u32 %v392, 8388608
        %v394 = vsub.s32 0, %v393
        %v395 = vadd.s32 %v390, 1
        %vm396 = vcmp.gt.s32.totalorder %v395, 0
        %v397 = vsel %vm396, %v395, 0
        %v398 = vshrl.u32 %v397, 5
        %v399 = vand.u32 %v397, 31
        %v400 = vsub.s32 32, %v399
        %v401 = vshrl.u32 683565275, %v400
        %v402 = vshll.u32 683565275, %v399
        %v403 = vshrl.u32 2475754826, %v400
        %v404 = vor.u32 %v402, %v403
        %v405 = vshll.u32 2475754826, %v399
        %v406 = vshrl.u32 2131351028, %v400
        %v407 = vor.u32 %v405, %v406
        %v408 = vshll.u32 2131351028, %v399
        %v409 = vshrl.u32 2102212464, %v400
        %v410 = vor.u32 %v408, %v409
        %v411 = vshll.u32 2102212464, %v399
        %v412 = vshrl.u32 920167782, %v400
        %v413 = vor.u32 %v411, %v412
        %v414 = vshll.u32 920167782, %v399
        %v415 = vshrl.u32 1326507024, %v400
        %v416 = vor.u32 %v414, %v415
        %vm417 = vcmp.lt.s32.totalorder %v398, 1
        %vm418 = vcmp.lt.s32.totalorder %v398, 2
        %vm419 = vcmp.lt.s32.totalorder %v398, 3
        %vm420 = vcmp.lt.s32.totalorder %v398, 4
        %v421 = vsel %vm417, %v401, %v404
        %v422 = vsel %vm420, %v410, 2102212464
        %v423 = vsel %vm419, %v407, %v422
        %v424 = vsel %vm418, %v421, %v423
        %v425 = vsel %vm417, %v404, %v407
        %v426 = vsel %vm420, %v413, 920167782
        %v427 = vsel %vm419, %v410, %v426
        %v428 = vsel %vm418, %v425, %v427
        %v429 = vsel %vm417, %v407, %v410
        %v430 = vsel %vm420, %v416, 1326507024
        %v431 = vsel %vm419, %v413, %v430
        %v432 = vsel %vm418, %v429, %v431
        %v433 = vshll.u32 %v393, 8
        %v434 = vand.u32 %v433, 65535
        %v435 = vshrl.u32 %v433, 16
        %v436 = vand.u32 %v432, 65535
        %v437 = vshrl.u32 %v432, 16
        %v438 = vmul.u32 %v434, %v436
        %v439 = vmul.u32 %v434, %v437
        %v440 = vmul.u32 %v435, %v436
        %v441 = vmul.u32 %v435, %v437
        %v442 = vshll.u32 %v439, 16
        %v443 = vshrl.u32 %v439, 16
        %v444 = vshll.u32 %v440, 16
        %v445 = vshrl.u32 %v440, 16
        %vm446 = vc.u32 %v438, %v442
        %v447 = vsel %vm446, 1, 0
        %v448 = vadd.s32 %v438, %v442
        %v449 = vadd.s32 %v441, %v447
        %vm450 = vc.u32 %v448, %v444
        %v451 = vsel %vm450, 1, 0
        %v452 = vadd.s32 %v448, %v444
        %v453 = vadd.s32 %v449, %v451
        %v454 = vadd.s32 %v453, %v443
        %v455 = vadd.s32 %v454, %v445
        %v456 = vand.u32 %v433, 65535
        %v457 = vshrl.u32 %v433, 16
        %v458 = vand.u32 %v428, 65535
        %v459 = vshrl.u32 %v428, 16
        %v460 = vmul.u32 %v456, %v458
        %v461 = vmul.u32 %v456, %v459
        %v462 = vmul.u32 %v457, %v458
        %v463 = vmul.u32 %v457, %v459
        %v464 = vshll.u32 %v461, 16
        %v465 = vshrl.u32 %v461, 16
        %v466 = vshll.u32 %v462, 16
        %v467 = vshrl.u32 %v462, 16
        %vm468 = vc.u32 %v460, %v464
        %v469 = vsel %vm468, 1, 0
        %v470 = vadd.s32 %v460, %v464
        %v471 = vadd.s32 %v463, %v469
        %vm472 = vc.u32 %v470, %v466
        %v473 = vsel %vm472, 1, 0
        %v474 = vadd.s32 %v470, %v466
        %v475 = vadd.s32 %v471, %v473
        %v476 = vadd.s32 %v475, %v465
        %v477 = vadd.s32 %v476, %v467
        %v478 = vmul.u32 %v433, %v424
        %v479 = vadd.s32 %v455, %v474
        %vm480 = vc.u32 %v455, %v474
        %v481 = vadd.s32 %v477, 1
        %v482 = vsel %vm480, %v481, %v477
        %v483 = vadd.s32 %v478, %v482
        %v484 = vadd.s32 %v483, 536870912
        %v485 = vshrl.u32 %v484, 30
        %v486 = vshll.u32 %v485, 30
        %v487 = vsub.s32 %v483, %v486
        %vm488 = vcmp.lt.s32.totalorder %v487, 0
        %v489 = vsub.s32 0, %v487
        %v490 = vsel %vm488, %v489, %v487
        %v491 = vclz %v490
        %v492 = vsub.s32 %v491, 2
        %vm493 = vcmp.gt.s32.totalorder 0, %v492
        %v494 = vsel %vm493, 0, %v492
        %v495 = vsub.s32 32, %v494
        %v496 = vshll.u32 %v487, %v494
        %v497 = vshrl.u32 %v479, %v495
        %v498 = vor.u32 %v496, %v497
        %v499 = vsub.s32 4294967266, %v494
        %v500 = vadd.s32 %v499, 127
        %v501 = vshll.u32 %v500, 23
        %v502 = vor.u32 4788187, %v501
        %v503 = vand.u32 2147483647, %v502
        %v505 = vcvt.s32.f32 %v498
        %v506 = vmul.f32 %v505, %v503
        %v507 = vxor.u32 %v506, 2147483648
        %v508 = vsel %vm387, %v507, %v506
        %v509 = vsub.s32 4, %v485
        %v510 = vsel %vm387, %v509, %v485
        %v511 = vsel %vm386, %v227, %v508
        %v512 = vsel %vm386, 0, %v510
        %v513 = vmul.f32 %v511, %v511
        %v514 = vmul.f32 %v513, -0.001358992
        %v515 = vadd.f32 %v514, 0.041655596
        %v516 = vmul.f32 %v513, %v515
        %v517 = vadd.f32 %v516, -0.4999988
        %v518 = vmul.f32 %v513, %v517
        %v519 = vadd.f32 1.0, %v518
        %v520 = vmul.f32 %v511, %v511
        %v521 = vmul.f32 %v520, -0.00019511016
        %v522 = vadd.f32 %v521, 0.008332121
        %v523 = vmul.f32 %v520, %v522
        %v524 = vadd.f32 %v523, -0.16666654
        %v525 = vmul.f32 %v520, %v524
        %v526 = vadd.f32 %v525, 1.0
        %v527 = vmul.f32 %v526, %v511
        %vm528 = vweird.f32 %v227
        %v529 = vadd.s32 %v512, 3
        %v530 = vand.u32 %v529, 3
        %vm531 = vcmp.lt.s32.totalorder %v530, 2
        %vm532 = vcmp.eq.s32.totalorder %v530, 0
        %v533 = vxor.u32 %v527, 2147483648
        %v534 = vsel %vm532, %v519, %v533
        %vm535 = vcmp.eq.s32.totalorder %v530, 2
        %v536 = vxor.u32 %v519, 2147483648
        %v537 = vsel %vm535, %v536, %v527
        %v538 = vsel %vm531, %v534, %v537
        %v539 = vsel %vm528, nan, %v538
        %v540 = vand.u32 2147483647, %v228
        %vm541 = vcmp.le.f32.partialorder %v540, 0.7853982
        %vm542 = vcmp.lt.s32.totalorder %v228, 0
        %v543 = vand.u32 %v228, 2139095040
        %v544 = vshrl.u32 %v543, 23
        %v545 = vsub.s32 %v544, 127
        %v546 = vand.u32 2147483647, %v228
        %v547 = vand.u32 %v546, 8388607
        %v548 = vor.u32 %v547, 8388608
        %v549 = vsub.s32 0, %v548
        %v550 = vadd.s32 %v545, 1
        %vm551 = vcmp.gt.s32.totalorder %v550, 0
        %v552 = vsel %vm551, %v550, 0
        %v553 = vshrl.u32 %v552, 5
        %v554 = vand.u32 %v552, 31
        %v555 = vsub.s32 32, %v554
        %v556 = vshrl.u32 683565275, %v555
        %v557 = vshll.u32 683565275, %v554
        %v558 = vshrl.u32 2475754826, %v555
        %v559 = vor.u32 %v557, %v558
        %v560 = vshll.u32 2475754826, %v554
        %v561 = vshrl.u32 2131351028, %v555
        %v562 = vor.u32 %v560, %v561
        %v563 = vshll.u32 2131351028, %v554
        %v564 = vshrl.u32 2102212464, %v555
        %v565 = vor.u32 %v563, %v564
        %v566 = vshll.u32 2102212464, %v554
        %v567 = vshrl.u32 920167782, %v555
        %v568 = vor.u32 %v566, %v567
        %v569 = vshll.u32 920167782, %v554
        %v570 = vshrl.u32 1326507024, %v555
        %v571 = vor.u32 %v569, %v570
        %vm572 = vcmp.lt.s32.totalorder %v553, 1
        %vm573 = vcmp.lt.s32.totalorder %v553, 2
        %vm574 = vcmp.lt.s32.totalorder %v553, 3
        %vm575 = vcmp.lt.s32.totalorder %v553, 4
        %v576 = vsel %vm572, %v556, %v559
        %v577 = vsel %vm575, %v565, 2102212464
        %v578 = vsel %vm574, %v562, %v577
        %v579 = vsel %vm573, %v576, %v578
        %v580 = vsel %vm572, %v559, %v562
        %v581 = vsel %vm575, %v568, 920167782
        %v582 = vsel %vm574, %v565, %v581
        %v583 = vsel %vm573, %v580, %v582
        %v584 = vsel %vm572, %v562, %v565
        %v585 = vsel %vm575, %v571, 1326507024
        %v586 = vsel %vm574, %v568, %v585
        %v587 = vsel %vm573, %v584, %v586
        %v588 = vshll.u32 %v548, 8
        %v589 = vand.u32 %v588, 65535
        %v590 = vshrl.u32 %v588, 16
        %v591 = vand.u32 %v587, 65535
        %v592 = vshrl.u32 %v587, 16
        %v593 = vmul.u32 %v589, %v591
        %v594 = vmul.u32 %v589, %v592
        %v595 = vmul.u32 %v590, %v591
        %v596 = vmul.u32 %v590, %v592
        %v597 = vshll.u32 %v594, 16
        %v598 = vshrl.u32 %v594, 16
        %v599 = vshll.u32 %v595, 16
        %v600 = vshrl.u32 %v595, 16
        %vm601 = vc.u32 %v593, %v597
        %v602 = vsel %vm601, 1, 0
        %v603 = vadd.s32 %v593, %v597
        %v604 = vadd.s32 %v596, %v602
        %vm605 = vc.u32 %v603, %v599
        %v606 = vsel %vm605, 1, 0
        %v607 = vadd.s32 %v603, %v599
        %v608 = vadd.s32 %v604, %v606
        %v609 = vadd.s32 %v608, %v598
        %v610 = vadd.s32 %v609, %v600
        %v611 = vand.u32 %v588, 65535
        %v612 = vshrl.u32 %v588, 16
        %v613 = vand.u32 %v583, 65535
        %v614 = vshrl.u32 %v583, 16
        %v615 = vmul.u32 %v611, %v613
        %v616 = vmul.u32 %v611, %v614
        %v617 = vmul.u32 %v612, %v613
        %v618 = vmul.u32 %v612, %v614
        %v619 = vshll.u32 %v616, 16
        %v620 = vshrl.u32 %v616, 16
        %v621 = vshll.u32 %v617, 16
        %v622 = vshrl.u32 %v617, 16
        %vm623 = vc.u32 %v615, %v619
        %v624 = vsel %vm623, 1, 0
        %v625 = vadd.s32 %v615, %v619
        %v626 = vadd.s32 %v618, %v624
        %vm627 = vc.u32 %v625, %v621
        %v628 = vsel %vm627, 1, 0
        %v629 = vadd.s32 %v625, %v621
        %v630 = vadd.s32 %v626, %v628
        %v631 = vadd.s32 %v630, %v620
        %v632 = vadd.s32 %v631, %v622
        %v633 = vmul.u32 %v588, %v579
        %v634 = vadd.s32 %v610, %v629
        %vm635 = vc.u32 %v610, %v629
        %v636 = vadd.s32 %v632, 1
        %v637 = vsel %vm635, %v636, %v632
        %v638 = vadd.s32 %v633, %v637
        %v639 = vadd.s32 %v638, 536870912
        %v640 = vshrl.u32 %v639, 30
        %v641 = vshll.u32 %v640, 30
        %v642 = vsub.s32 %v638, %v641
        %vm643 = vcmp.lt.s32.totalorder %v642, 0
        %v644 = vsub.s32 0, %v642
        %v645 = vsel %vm643, %v644, %v642
        %v646 = vclz %v645
        %v647 = vsub.s32 %v646, 2
        %vm648 = vcmp.gt.s32.totalorder 0, %v647
        %v649 = vsel %vm648, 0, %v647
        %v650 = vsub.s32 32, %v649
        %v651 = vshll.u32 %v642, %v649
        %v652 = vshrl.u32 %v634, %v650
        %v653 = vor.u32 %v651, %v652
        %v654 = vsub.s32 4294967266, %v649
        %v655 = vadd.s32 %v654, 127
        %v656 = vshll.u32 %v655, 23
        %v657 = vor.u32 4788187, %v656
        %v658 = vand.u32 2147483647, %v657
        %v660 = vcvt.s32.f32 %v653
        %v661 = vmul.f32 %v660, %v658
        %v662 = vxor.u32 %v661, 2147483648
        %v663 = vsel %vm542, %v662, %v661
        %v664 = vsub.s32 4, %v640
        %v665 = vsel %vm542, %v664, %v640
        %v666 = vsel %vm541, %v228, %v663
        %v667 = vsel %vm541, 0, %v665
        %v668 = vmul.f32 %v666, %v666
        %v669 = vmul.f32 %v668, -0.001358992
        %v670 = vadd.f32 %v669, 0.041655596
        %v671 = vmul.f32 %v668, %v670
        %v672 = vadd.f32 %v671, -0.4999988
        %v673 = vmul.f32 %v668, %v672
        %v674 = vadd.f32 1.0, %v673
        %v675 = vmul.f32 %v666, %v666
        %v676 = vmul.f32 %v675, -0.00019511016
        %v677 = vadd.f32 %v676, 0.008332121
        %v678 = vmul.f32 %v675, %v677
        %v679 = vadd.f32 %v678, -0.16666654
        %v680 = vmul.f32 %v675, %v679
        %v681 = vadd.f32 %v680, 1.0
        %v682 = vmul.f32 %v681, %v666
        %vm683 = vweird.f32 %v228
        %v684 = vadd.s32 %v667, 3
        %v685 = vand.u32 %v684, 3
        %vm686 = vcmp.lt.s32.totalorder %v685, 2
        %vm687 = vcmp.eq.s32.totalorder %v685, 0
        %v688 = vxor.u32 %v682, 2147483648
        %v689 = vsel %vm687, %v674, %v688
        %vm690 = vcmp.eq.s32.totalorder %v685, 2
        %v691 = vxor.u32 %v674, 2147483648
        %v692 = vsel %vm690, %v691, %v682
        %v693 = vsel %vm686, %v689, %v692
        %v694 = vsel %vm683, nan, %v693
        %v695 = vand.u32 2147483647, %v229
        %vm696 = vcmp.le.f32.partialorder %v695, 0.7853982
        %vm697 = vcmp.lt.s32.totalorder %v229, 0
        %v698 = vand.u32 %v229, 2139095040
        %v699 = vshrl.u32 %v698, 23
        %v700 = vsub.s32 %v699, 127
        %v701 = vand.u32 2147483647, %v229
        %v702 = vand.u32 %v701, 8388607
        %v703 = vor.u32 %v702, 8388608
        %v704 = vsub.s32 0, %v703
        %v705 = vadd.s32 %v700, 1
        %vm706 = vcmp.gt.s32.totalorder %v705, 0
        %v707 = vsel %vm706, %v705, 0
        %v708 = vshrl.u32 %v707, 5
        %v709 = vand.u32 %v707, 31
        %v710 = vsub.s32 32, %v709
        %v711 = vshrl.u32 683565275, %v710
        %v712 = vshll.u32 683565275, %v709
        %v713 = vshrl.u32 2475754826, %v710
        %v714 = vor.u32 %v712, %v713
        %v715 = vshll.u32 2475754826, %v709
        %v716 = vshrl.u32 2131351028, %v710
        %v717 = vor.u32 %v715, %v716
        %v718 = vshll.u32 2131351028, %v709
        %v719 = vshrl.u32 2102212464, %v710
        %v720 = vor.u32 %v718, %v719
        %v721 = vshll.u32 2102212464, %v709
        %v722 = vshrl.u32 920167782, %v710
        %v723 = vor.u32 %v721, %v722
        %v724 = vshll.u32 920167782, %v709
        %v725 = vshrl.u32 1326507024, %v710
        %v726 = vor.u32 %v724, %v725
        %vm727 = vcmp.lt.s32.totalorder %v708, 1
        %vm728 = vcmp.lt.s32.totalorder %v708, 2
        %vm729 = vcmp.lt.s32.totalorder %v708, 3
        %vm730 = vcmp.lt.s32.totalorder %v708, 4
        %v731 = vsel %vm727, %v711, %v714
        %v732 = vsel %vm730, %v720, 2102212464
        %v733 = vsel %vm729, %v717, %v732
        %v734 = vsel %vm728, %v731, %v733
        %v735 = vsel %vm727, %v714, %v717
        %v736 = vsel %vm730, %v723, 920167782
        %v737 = vsel %vm729, %v720, %v736
        %v738 = vsel %vm728, %v735, %v737
        %v739 = vsel %vm727, %v717, %v720
        %v740 = vsel %vm730, %v726, 1326507024
        %v741 = vsel %vm729, %v723, %v740
        %v742 = vsel %vm728, %v739, %v741
        %v743 = vshll.u32 %v703, 8
        %v744 = vand.u32 %v743, 65535
        %v745 = vshrl.u32 %v743, 16
        %v746 = vand.u32 %v742, 65535
        %v747 = vshrl.u32 %v742, 16
        %v748 = vmul.u32 %v744, %v746
        %v749 = vmul.u32 %v744, %v747
        %v750 = vmul.u32 %v745, %v746
        %v751 = vmul.u32 %v745, %v747
        %v752 = vshll.u32 %v749, 16
        %v753 = vshrl.u32 %v749, 16
        %v754 = vshll.u32 %v750, 16
        %v755 = vshrl.u32 %v750, 16
        %vm756 = vc.u32 %v748, %v752
        %v757 = vsel %vm756, 1, 0
        %v758 = vadd.s32 %v748, %v752
        %v759 = vadd.s32 %v751, %v757
        %vm760 = vc.u32 %v758, %v754
        %v761 = vsel %vm760, 1, 0
        %v762 = vadd.s32 %v758, %v754
        %v763 = vadd.s32 %v759, %v761
        %v764 = vadd.s32 %v763, %v753
        %v765 = vadd.s32 %v764, %v755
        %v766 = vand.u32 %v743, 65535
        %v767 = vshrl.u32 %v743, 16
        %v768 = vand.u32 %v738, 65535
        %v769 = vshrl.u32 %v738, 16
        %v770 = vmul.u32 %v766, %v768
        %v771 = vmul.u32 %v766, %v769
        %v772 = vmul.u32 %v767, %v768
        %v773 = vmul.u32 %v767, %v769
        %v774 = vshll.u32 %v771, 16
        %v775 = vshrl.u32 %v771, 16
        %v776 = vshll.u32 %v772, 16
        %v777 = vshrl.u32 %v772, 16
        %vm778 = vc.u32 %v770, %v774
        %v779 = vsel %vm778, 1, 0
        %v780 = vadd.s32 %v770, %v774
        %v781 = vadd.s32 %v773, %v779
        %vm782 = vc.u32 %v780, %v776
        %v783 = vsel %vm782, 1, 0
        %v784 = vadd.s32 %v780, %v776
        %v785 = vadd.s32 %v781, %v783
        %v786 = vadd.s32 %v785, %v775
        %v787 = vadd.s32 %v786, %v777
        %v788 = vmul.u32 %v743, %v734
        %v789 = vadd.s32 %v765, %v784
        %vm790 = vc.u32 %v765, %v784
        %v791 = vadd.s32 %v787, 1
        %v792 = vsel %vm790, %v791, %v787
        %v793 = vadd.s32 %v788, %v792
        %v794 = vadd.s32 %v793, 536870912
        %v795 = vshrl.u32 %v794, 30
        %v796 = vshll.u32 %v795, 30
        %v797 = vsub.s32 %v793, %v796
        %vm798 = vcmp.lt.s32.totalorder %v797, 0
        %v799 = vsub.s32 0, %v797
        %v800 = vsel %vm798, %v799, %v797
        %v801 = vclz %v800
        %v802 = vsub.s32 %v801, 2
        %vm803 = vcmp.gt.s32.totalorder 0, %v802
        %v804 = vsel %vm803, 0, %v802
        %v805 = vsub.s32 32, %v804
        %v806 = vshll.u32 %v797, %v804
        %v807 = vshrl.u32 %v789, %v805
        %v808 = vor.u32 %v806, %v807
        %v809 = vsub.s32 4294967266, %v804
        %v810 = vadd.s32 %v809, 127
        %v811 = vshll.u32 %v810, 23
        %v812 = vor.u32 4788187, %v811
        %v813 = vand.u32 2147483647, %v812
        %v815 = vcvt.s32.f32 %v808
        %v816 = vmul.f32 %v815, %v813
        %v817 = vxor.u32 %v816, 2147483648
        %v818 = vsel %vm697, %v817, %v816
        %v819 = vsub.s32 4, %v795
        %v820 = vsel %vm697, %v819, %v795
        %v821 = vsel %vm696, %v229, %v818
        %v822 = vsel %vm696, 0, %v820
        %v823 = vmul.f32 %v821, %v821
        %v824 = vmul.f32 %v823, -0.001358992
        %v825 = vadd.f32 %v824, 0.041655596
        %v826 = vmul.f32 %v823, %v825
        %v827 = vadd.f32 %v826, -0.4999988
        %v828 = vmul.f32 %v823, %v827
        %v829 = vadd.f32 1.0, %v828
        %v830 = vmul.f32 %v821, %v821
        %v831 = vmul.f32 %v830, -0.00019511016
        %v832 = vadd.f32 %v831, 0.008332121
        %v833 = vmul.f32 %v830, %v832
        %v834 = vadd.f32 %v833, -0.16666654
        %v835 = vmul.f32 %v830, %v834
        %v836 = vadd.f32 %v835, 1.0
        %v837 = vmul.f32 %v836, %v821
        %vm838 = vweird.f32 %v229
        %v839 = vadd.s32 %v822, 3
        %v840 = vand.u32 %v839, 3
        %vm841 = vcmp.lt.s32.totalorder %v840, 2
        %vm842 = vcmp.eq.s32.totalorder %v840, 0
        %v843 = vxor.u32 %v837, 2147483648
        %v844 = vsel %vm842, %v829, %v843
        %vm845 = vcmp.eq.s32.totalorder %v840, 2
        %v846 = vxor.u32 %v829, 2147483648
        %v847 = vsel %vm845, %v846, %v837
        %v848 = vsel %vm841, %v844, %v847
        %v849 = vsel %vm838, nan, %v848
        %850 = vst [vmem:[%s178] sm:$0xff] %v384
        %851 = vst [vmem:[%s178 + $0x8] sm:$0xff] %v539
        %852 = vst [vmem:[%s178 + $0x10] sm:$0xff] %v694
        %853 = vst [vmem:[%s178 + $0x18] sm:$0xff] %v849
        %s854 = sand.u32 %s75, 1
        %s855 = scalar_lea.sflag [#allocation4], %s854
        %s856 = sand.u32 %s75, 1
        %s857 = smul.addr %s856, 32
        %s858 = scalar_lea.vmem [#allocation7], %s857
        // Predicated region
        $region37: #{tpu_custom_call.1} parent=27 // pred_check
          %p859 = pneg %p85
        $region38: #{tpu_custom_call.1} parent=27 // pred_check_branch
          %861 = sbr.rel (%p859) target = $region40
        $region39: #{tpu_custom_call.1} parent=27 // pred_region
          %s862 = smul.u32 4, %s20
          %864 = vsyncadd %s855, 0
          %s865 = smul.addr %s862, 8
          %s866 = scalar_lea.hbm %s2, %s865
          %s867 = sshll.u32 %s858, 4
          %s868 = int_to_ptr.vmem [resolvable:$true] %s867
          %s869 = sshll.u32 %s866, 4
          %s870 = int_to_ptr.hbm [resolvable:$true] %s869
          %875 = dma.vmem_to_hbm [thread:$0]  %s868, 512, %s870, %s855, 128, 128, 8
        $region40: #{tpu_custom_call.1} parent=27 // pred_fallthru
          _
      $region28: #{tpu_custom_call.1} parent=5 // pred_fallthru
        _
      %p876 = scmp.le.s32.totalorder 2, %s15
      // Predicated region
      $region41: #{tpu_custom_call.1} parent=5 // pred_check
        %p877 = pneg %p876
      $region42: #{tpu_custom_call.1} parent=5 // pred_check_branch
        %879 = sbr.rel (%p877) target = $region44
      $region43: #{tpu_custom_call.1} parent=5 // pred_region
        %s880 = ssub.s32 %s15, 2
        // Predicated region
        $region45: #{tpu_custom_call.1} parent=43 // pred_check
          %p881 = pneg %p91
        $region46: #{tpu_custom_call.1} parent=43 // pred_check_branch
          %883 = sbr.rel (%p881) target = $region48
        $region47: #{tpu_custom_call.1} parent=43 // pred_region
          %s884 = sand.u32 %s76, 1
          %s885 = scalar_lea.sflag [#allocation4], %s884
          %s886 = sand.u32 %s76, 1
          %s887 = smul.addr %s886, 32
          %s888 = scalar_lea.vmem [#allocation7], %s887
          %890 = dma.done %s885, 512
        $region48: #{tpu_custom_call.1} parent=43 // pred_fallthru
          _
      $region44: #{tpu_custom_call.1} parent=5 // pred_fallthru
        _
    $region6: #{tpu_custom_call.1} parent=1 // loop_footer
      %s19 = sadd.s32 1, %s15
    $region7: #{tpu_custom_call.1} parent=1 // loop_footer_branch
      %14 = sbr.rel target = $region3
    $region8: #{tpu_custom_call.1} parent=1 // loop_exit
      _
    %891 = vsyncpa [#allocation3], 1
    %s892 = scalar_lea.sflag [#allocation3], 1
    %893 = vsyncpa %s892, 1
    %894 = vsyncpa [#allocation6], 1
    %895 = vsyncpa [#allocation4], 1
    %s896 = scalar_lea.sflag [#allocation4], 1
    %897 = vsyncpa %s896, 1

</llo_original>
